<compile_context>
chip_gen: v7x
topology: tpu7x:2x2x1
jax: 0.10.0
libtpu: 0.0.40
codegen_flags: <defaults>
</compile_context>

<pallas_src>
import jax
import jax.numpy as jnp
from jax.experimental import pallas as pl
from jax.experimental.pallas import tpu as pltpu


def _sigmoid_mul_kernel(gate_ref, x_ref, o_ref):
    # gate_ref: (rows, 1)  per-row gate logits for this block
    # x_ref:    (rows, HW) feature row-block
    # o_ref:    (rows, HW)
    g = gate_ref[...].astype(jnp.float32)          # tiny: rows x 1
    s = 1.0 / (1.0 + jnp.exp(-g))                  # exact sigmoid, f32 (EUP)
    # Broadcast multiply over the lane (spatial) axis in the feature dtype
    # (bf16 VALU on v6e/v7x; Mosaic handles the upconvert on v5e).
    o_ref[...] = s.astype(o_ref.dtype) * x_ref[...]


def _row_blocking(nc: int):
    """Return (n_blocks, rows_per_block).

    Prefer 2 row blocks so v7x can shard across its two TensorCores
    (dimension_semantics="parallel"); rows per block must be a multiple of 8
    (sublane tiling).  NC that is not a multiple of 16 is handled by covering
    it with a cdiv grid (Pallas masks the partial last block), instead of the
    old silent fallback to a single block.
    """
    if nc <= 8:
        return 1, nc                      # full-extent block (== array dim) is legal
    rows = ((pl.cdiv(nc, 2) + 7) // 8) * 8
    return pl.cdiv(nc, rows), rows


def sigmoid_mul(x175, x171):
    """x175: (N, C, 1, 1) gate logits, x171: (N, C, H, W) features.

    Returns sigmoid(x175) * x171 with the same shape/dtype as x171.
    """
    N, C, H, W = x171.shape
    assert x175.shape == (N, C, 1, 1)
    NC, HW = N * C, H * W

    x2d = x171.reshape(NC, HW)      # channels -> sublanes, spatial -> lanes
    g_col = x175.reshape(NC, 1)     # per-row gate column (~2 KiB DMA, hidden)

    n_blocks, rows = _row_blocking(NC)

    out2d = pl.pallas_call(
        _sigmoid_mul_kernel,
        out_shape=jax.ShapeDtypeStruct((NC, HW), x171.dtype),
        grid=(n_blocks,),
        in_specs=[
            pl.BlockSpec((rows, 1), lambda i: (i, 0)),    # gate rows for block i
            pl.BlockSpec((rows, HW), lambda i: (i, 0)),   # feature rows for block i
        ],
        out_specs=pl.BlockSpec((rows, HW), lambda i: (i, 0)),
        compiler_params=pltpu.CompilerParams(
            dimension_semantics=("parallel",),            # disjoint row blocks
        ),
    )(g_col, x2d)

    return out2d.reshape(N, C, H, W)

# TODO(synk): biggest remaining win is fusing sigmoid(x175)*x171 into the
# producing SE-block conv/matmul epilogue (or letting XLA fuse it); as a
# standalone op (~0.75 MB HBM traffic) it is launch/DMA-overhead bound.
# A channels-last (N*H*W, C) view would give fully lane-dense stores
# (480->512 = 94% lane utilization vs HW=196->256 = 76%), but only pays off
# if the NCHW->NHWC transpose fuses into the producer, so it is not done here.


if __name__ == "__main__":
    key = jax.random.PRNGKey(0)
    k1, k2 = jax.random.split(key)
    # Shapes from the module: x171 = (1, 480, 14, 14), x175 = (1, 480, 1, 1)
    x171 = jax.random.normal(k1, (1, 480, 14, 14), dtype=jnp.float32)
    x175 = jax.random.normal(k2, (1, 480, 1, 1), dtype=jnp.float32)

    out = sigmoid_mul(x175, x171)
    jax.block_until_ready(out)

    # Correctness check against plain-JAX reference
    ref = jax.nn.sigmoid(x175) * x171
    assert out.shape == (1, 480, 14, 14)
    assert out.dtype == x171.dtype
    assert jnp.allclose(out, ref, atol=1e-6, rtol=1e-5)
    print("KERNEL_OK")
</pallas_src>

<mosaic_0001>
module attributes {stable_mosaic.version = 11 : i64} {
  func.func @_sigmoid_mul_kernel(%arg0: i32, %arg1: memref<240x1xf32, #tpu.memory_space<vmem>>, %arg2: memref<240x196xf32, #tpu.memory_space<vmem>>, %arg3: memref<240x196xf32, #tpu.memory_space<vmem>>) attributes {dimension_semantics = [#tpu.dimension_semantics<parallel>], iteration_bounds = array<i64: 2>, scalar_prefetch = 0 : i64, scratch_operands = 0 : i64, tpu.core_type = #tpu.core_type<tc>, window_params = [{transform_indices = @transform_0, window_bounds = array<i64: 240, 1>}, {transform_indices = @transform_1, window_bounds = array<i64: 240, 196>}, {transform_indices = @transform_2, window_bounds = array<i64: 240, 196>}]} {
    %c0 = arith.constant 0 : index
    %c0_0 = arith.constant 0 : index
    %0 = vector.load %arg1[%c0, %c0_0] : memref<240x1xf32, #tpu.memory_space<vmem>>, vector<240x1xf32>
    %cst = arith.constant 0.000000e+00 : f32
    %1 = vector.broadcast %cst : f32 to vector<240x1xf32>
    %2 = arith.subf %1, %0 : vector<240x1xf32>
    %3 = math.exp %2 : vector<240x1xf32>
    %cst_1 = arith.constant 1.000000e+00 : f32
    %4 = vector.broadcast %cst_1 : f32 to vector<240x1xf32>
    %5 = arith.addf %4, %3 : vector<240x1xf32>
    %cst_2 = arith.constant 1.000000e+00 : f32
    %6 = vector.broadcast %cst_2 : f32 to vector<240x1xf32>
    %7 = arith.divf %6, %5 : vector<240x1xf32>
    %c0_3 = arith.constant 0 : index
    %c0_4 = arith.constant 0 : index
    %8 = vector.load %arg2[%c0_3, %c0_4] : memref<240x196xf32, #tpu.memory_space<vmem>>, vector<240x196xf32>
    %9 = vector.broadcast %7 : vector<240x1xf32> to vector<240x196xf32>
    %10 = arith.mulf %9, %8 : vector<240x196xf32>
    %c0_5 = arith.constant 0 : index
    %c0_6 = arith.constant 0 : index
    %11 = vector.load %arg3[%c0_5, %c0_6] : memref<240x196xf32, #tpu.memory_space<vmem>>, vector<240x196xf32>
    tpu.vector_store %arg3[%c0_5, %c0_6], %10 {strides = array<i32>} : memref<240x196xf32, #tpu.memory_space<vmem>>, vector<240x196xf32>,
    return
  }
  func.func @transform_0(%arg0: i32) -> (i32, i32) {
    %c0_i32 = arith.constant 0 : i32
    %c0_i32_0 = arith.constant 0 : i32
    return %arg0, %c0_i32 : i32, i32
  }
  func.func @transform_1(%arg0: i32) -> (i32, i32) {
    %c0_i32 = arith.constant 0 : i32
    %c0_i32_0 = arith.constant 0 : i32
    return %arg0, %c0_i32 : i32, i32
  }
  func.func @transform_2(%arg0: i32) -> (i32, i32) {
    %c0_i32 = arith.constant 0 : i32
    %c0_i32_0 = arith.constant 0 : i32
    return %arg0, %c0_i32 : i32, i32
  }
}

</mosaic_0001>

<llo_original>
// kernel: tpu_custom_call.1
$region0: #{tpu_custom_call.1}
  #allocation0 [shape = 'u32[]', space=smem, size = 0x4, offset = 0x4, fixed_abs, tag = 'smem constant byte address 0x4 - core index']
  #allocation1 [shape = 'u32[144,128]{1,0:T(1,128)}', space=vmem, size = 0x12000, scoped, tag = 'internal scratch']
  %s0 = inlined_call_operand.vmem [shape: f32[480,1], index: 0, kind: input, shape index: {}]
  %s1 = inlined_call_operand.vmem [shape: f32[480,196], index: 1, kind: input, shape index: {}]
  %s2 = inlined_call_operand.vmem [shape: f32[480,196], index: 2, kind: output, shape index: {}]
  %s3 = sld [smem:[#allocation0]]
  $region41: #{tpu_custom_call.1} parent=0
    _
  %s5 = ssub.s32 1, %s3
  %s6 = scalar_select 0, %s5, %s3
  loop: start=0, step=1, limit=4
  $region2: #{tpu_custom_call.1} parent=0 // loop_pre_header
    _
  $region3: #{tpu_custom_call.1} parent=0 // loop_header
    %s8 = sphi 0, %s12
    %p9 = scmp.ge.s32.totalorder %s8, 4
    %s18 = sphi 0, %s20
    %s21 = sphi 0, %s18
    %s22 = sphi 0, %s21
    %s38 = sphi 0, %s22
    %s44 = sphi 0, %s46
    %s47 = sphi 0, %s44
    %s48 = sphi 0, %s47
    %s64 = sphi 0, %s48
    %s70 = sphi 0, %s72
    %s73 = sphi 0, %s70
    %s74 = sphi 0, %s73
    %s90 = sphi 0, %s74
  $region4: #{tpu_custom_call.1} parent=0 // loop_header_branch
    %11 = sbr.rel (%p9) target = $region8
  $region5: #{tpu_custom_call.1} parent=0 // loop_body
    %s13 = ssub.s32 %s8, 1
    %s14 = ssub.s32 %s8, 2
    %s15 = sadd.s32 %s8, 1
    %s16 = ssub.s32 %s8, %s15
    %p17 = scmp.eq.s32.totalorder %s16, 0
    %s19 = sadd.s32 %s18, 1
    %s20 = scalar_select %p17, %s18, %s19
    %p23 = pneg %p17
    %p24 = scmp.eq.s32.totalorder %s8, 1
    %p25 = por %p23, %p24
    %p26 = scmp.ne.s32.totalorder %s18, %s21
    %p27 = scmp.eq.s32.totalorder %s8, 0
    %p28 = por %p26, %p27
    %p29 = scmp.ne.s32.totalorder %s18, %s21
    %p30 = scmp.eq.s32.totalorder %s13, 1
    %p31 = por %p29, %p30
    %p32 = scmp.ne.s32.totalorder %s21, %s22
    %p33 = scmp.eq.s32.totalorder %s13, 0
    %p34 = por %p32, %p33
    %p35 = scmp.ne.s32.totalorder %s21, %s22
    %p36 = scmp.eq.s32.totalorder %s14, 1
    %p37 = por %p35, %p36
    %p39 = scmp.ne.s32.totalorder %s22, %s38
    %p40 = scmp.eq.s32.totalorder %s14, 0
    %p41 = por %p39, %p40
    %s42 = ssub.s32 %s8, %s15
    %p43 = scmp.eq.s32.totalorder %s42, 0
    %s45 = sadd.s32 %s44, 1
    %s46 = scalar_select %p43, %s44, %s45
    %p49 = pneg %p43
    %p50 = scmp.eq.s32.totalorder %s8, 1
    %p51 = por %p49, %p50
    %p52 = scmp.ne.s32.totalorder %s44, %s47
    %p53 = scmp.eq.s32.totalorder %s8, 0
    %p54 = por %p52, %p53
    %p55 = scmp.ne.s32.totalorder %s44, %s47
    %p56 = scmp.eq.s32.totalorder %s13, 1
    %p57 = por %p55, %p56
    %p58 = scmp.ne.s32.totalorder %s47, %s48
    %p59 = scmp.eq.s32.totalorder %s13, 0
    %p60 = por %p58, %p59
    %p61 = scmp.ne.s32.totalorder %s47, %s48
    %p62 = scmp.eq.s32.totalorder %s14, 1
    %p63 = por %p61, %p62
    %p65 = scmp.ne.s32.totalorder %s48, %s64
    %p66 = scmp.eq.s32.totalorder %s14, 0
    %p67 = por %p65, %p66
    %s68 = ssub.s32 %s8, %s15
    %p69 = scmp.eq.s32.totalorder %s68, 0
    %s71 = sadd.s32 %s70, 1
    %s72 = scalar_select %p69, %s70, %s71
    %p75 = pneg %p69
    %p76 = scmp.eq.s32.totalorder %s8, 1
    %p77 = por %p75, %p76
    %p78 = scmp.ne.s32.totalorder %s70, %s73
    %p79 = scmp.eq.s32.totalorder %s8, 0
    %p80 = por %p78, %p79
    %p81 = scmp.ne.s32.totalorder %s70, %s73
    %p82 = scmp.eq.s32.totalorder %s13, 1
    %p83 = por %p81, %p82
    %p84 = scmp.ne.s32.totalorder %s73, %s74
    %p85 = scmp.eq.s32.totalorder %s13, 0
    %p86 = por %p84, %p85
    %p87 = scmp.ne.s32.totalorder %s73, %s74
    %p88 = scmp.eq.s32.totalorder %s14, 1
    %p89 = por %p87, %p88
    %p91 = scmp.ne.s32.totalorder %s74, %s90
    %p92 = scmp.eq.s32.totalorder %s14, 0
    %p93 = por %p91, %p92
    %p94 = scmp.le.s32.totalorder 1, %s8
    %p95 = scmp.lt.s32.totalorder %s8, 3
    %p96 = pnand %p94, %p95
    %p97 = pneg %p96
    // Predicated region
    $region9: #{tpu_custom_call.1} parent=5 // pred_check
      _
    $region10: #{tpu_custom_call.1} parent=5 // pred_check_branch
      %99 = sbr.rel (%p96) target = $region12
    $region11: #{tpu_custom_call.1} parent=5 // pred_region
      %s100 = ssub.s32 %s8, 1
    $region12: #{tpu_custom_call.1} parent=5 // pred_fallthru
      _
    %p101 = scmp.lt.s32.totalorder %s8, 2
    // Predicated region
    $region13: #{tpu_custom_call.1} parent=5 // pred_check
      %p102 = pneg %p101
    $region14: #{tpu_custom_call.1} parent=5 // pred_check_branch
      %104 = sbr.rel (%p102) target = $region16
    $region15: #{tpu_custom_call.1} parent=5 // pred_region
      // Predicated region
      $region17: #{tpu_custom_call.1} parent=15 // pred_check
        %p105 = pneg %p28
      $region18: #{tpu_custom_call.1} parent=15 // pred_check_branch
        %107 = sbr.rel (%p105) target = $region20
      $region19: #{tpu_custom_call.1} parent=15 // pred_region
        %s108 = smul.u32 30, %s8
        %p109 = scmp.lt.s32.totalorder %s108, 59
        %s110 = scalar_select %p109, %s108, 59
        %s111 = smul.addr %s110, 8
        %s112 = scalar_lea.vmem %s0, %s111
        %s113 = smul.u32 30, %s8
      $region20: #{tpu_custom_call.1} parent=15 // pred_fallthru
        _
      // Predicated region
      $region21: #{tpu_custom_call.1} parent=15 // pred_check
        %p114 = pneg %p54
      $region22: #{tpu_custom_call.1} parent=15 // pred_check_branch
        %116 = sbr.rel (%p114) target = $region24
      $region23: #{tpu_custom_call.1} parent=15 // pred_region
        %s117 = smul.u32 30, %s8
        %p118 = scmp.lt.s32.totalorder %s117, 59
        %s119 = scalar_select %p118, %s117, 59
        %s120 = smul.addr %s119, 2
        %s121 = smul.addr %s120, 8
        %s122 = scalar_lea.vmem %s1, %s121
        %s123 = smul.u32 30, %s8
      $region24: #{tpu_custom_call.1} parent=15 // pred_fallthru
        _
    $region16: #{tpu_custom_call.1} parent=5 // pred_fallthru
      _
    %p124 = scmp.le.s32.totalorder 1, %s8
    %p125 = scmp.lt.s32.totalorder %s8, 3
    %p126 = pnand %p124, %p125
    %p127 = pneg %p126
    // Predicated region
    $region25: #{tpu_custom_call.1} parent=5 // pred_check
      _
    $region26: #{tpu_custom_call.1} parent=5 // pred_check_branch
      %129 = sbr.rel (%p126) target = $region28
    $region27: #{tpu_custom_call.1} parent=5 // pred_region
      %s130 = ssub.s32 %s8, 1
      %s131 = smul.u32 30, %s13
      %p132 = scmp.lt.s32.totalorder %s131, 59
      %s133 = scalar_select %p132, %s131, 59
      %s134 = smul.addr %s133, 8
      %s135 = scalar_lea.vmem %s0, %s134
      %p136 = pneg %p34
      %p137 = pneg %p31
      %s138 = smul.u32 30, %s13
      %p139 = scmp.lt.s32.totalorder %s138, 59
      %s140 = scalar_select %p139, %s138, 59
      %s141 = smul.addr %s140, 2
      %s142 = smul.addr %s141, 8
      %s143 = scalar_lea.vmem %s1, %s142
      %p144 = pneg %p60
      %p145 = pneg %p57
      %p146 = pneg %p86
      %p147 = pneg %p83
      %s148 = smul.u32 30, %s13
      %p149 = scmp.lt.s32.totalorder %s148, 59
      %s150 = scalar_select %p149, %s148, 59
      %s151 = smul.addr %s150, 2
      %s152 = smul.addr %s151, 8
      %s153 = scalar_lea.vmem %s2, %s152
      %s154 = smul.u32 30, %s13
      %p155 = scmp.lt.s32.totalorder %s154, 59
      %s156 = scalar_select %p155, %s154, 59
      %s157 = smul.addr %s156, 8
      %s158 = scalar_lea.vmem %s0, %s157
      %s159 = smul.u32 30, %s13
      %s160 = smul.u32 30, %s13
      %p161 = scmp.lt.s32.totalorder %s160, 59
      %s162 = scalar_select %p161, %s160, 59
      %s163 = smul.addr %s162, 2
      %s164 = smul.addr %s163, 8
      %s165 = scalar_lea.vmem %s1, %s164
      %s166 = smul.u32 30, %s13
      %s167 = smul.u32 30, %s13
      %p168 = scmp.lt.s32.totalorder %s167, 59
      %s169 = scalar_select %p168, %s167, 59
      %s170 = smul.addr %s169, 2
      %s171 = smul.addr %s170, 8
      %s172 = scalar_lea.vmem %s2, %s171
      %s173 = smul.u32 30, %s13
      %v174 = vld [vmem:[%s158] sm:$0xff]
      %v175 = vld [vmem:[%s158 + $0x8] sm:$0xff]
      %v176 = vld [vmem:[%s158 + $0x10] sm:$0xff]
      %v177 = vld [vmem:[%s158 + $0x18] sm:$0xff]
      %v178 = vld [vmem:[%s158 + $0x20] sm:$0xff]
      %v179 = vld [vmem:[%s158 + $0x28] sm:$0xff]
      %v180 = vld [vmem:[%s158 + $0x30] sm:$0xff]
      %v181 = vld [vmem:[%s158 + $0x38] sm:$0xff]
      %v182 = vld [vmem:[%s158 + $0x40] sm:$0xff]
      %v183 = vld [vmem:[%s158 + $0x48] sm:$0xff]
      %v184 = vld [vmem:[%s158 + $0x50] sm:$0xff]
      %v185 = vld [vmem:[%s158 + $0x58] sm:$0xff]
      %v186 = vld [vmem:[%s158 + $0x60] sm:$0xff]
      %v187 = vld [vmem:[%s158 + $0x68] sm:$0xff]
      %v188 = vld [vmem:[%s158 + $0x70] sm:$0xff]
      %v189 = vld [vmem:[%s158 + $0x78] sm:$0xff]
      %v190 = vld [vmem:[%s158 + $0x80] sm:$0xff]
      %v191 = vld [vmem:[%s158 + $0x88] sm:$0xff]
      %v192 = vld [vmem:[%s158 + $0x90] sm:$0xff]
      %v193 = vld [vmem:[%s158 + $0x98] sm:$0xff]
      %v194 = vld [vmem:[%s158 + $0xa0] sm:$0xff]
      %v195 = vld [vmem:[%s158 + $0xa8] sm:$0xff]
      %v196 = vld [vmem:[%s158 + $0xb0] sm:$0xff]
      %v197 = vld [vmem:[%s158 + $0xb8] sm:$0xff]
      %v198 = vld [vmem:[%s158 + $0xc0] sm:$0xff]
      %v199 = vld [vmem:[%s158 + $0xc8] sm:$0xff]
      %v200 = vld [vmem:[%s158 + $0xd0] sm:$0xff]
      %v201 = vld [vmem:[%s158 + $0xd8] sm:$0xff]
      %v202 = vld [vmem:[%s158 + $0xe0] sm:$0xff]
      %v203 = vld [vmem:[%s158 + $0xe8] sm:$0xff]
      %v204 = vsub.f32 0.0, %v174
      %v205 = vsub.f32 0.0, %v175
      %v206 = vsub.f32 0.0, %v176
      %v207 = vsub.f32 0.0, %v177
      %v208 = vsub.f32 0.0, %v178
      %v209 = vsub.f32 0.0, %v179
      %v210 = vsub.f32 0.0, %v180
      %v211 = vsub.f32 0.0, %v181
      %v212 = vsub.f32 0.0, %v182
      %v213 = vsub.f32 0.0, %v183
      %v214 = vsub.f32 0.0, %v184
      %v215 = vsub.f32 0.0, %v185
      %v216 = vsub.f32 0.0, %v186
      %v217 = vsub.f32 0.0, %v187
      %v218 = vsub.f32 0.0, %v188
      %v219 = vsub.f32 0.0, %v189
      %v220 = vsub.f32 0.0, %v190
      %v221 = vsub.f32 0.0, %v191
      %v222 = vsub.f32 0.0, %v192
      %v223 = vsub.f32 0.0, %v193
      %v224 = vsub.f32 0.0, %v194
      %v225 = vsub.f32 0.0, %v195
      %v226 = vsub.f32 0.0, %v196
      %v227 = vsub.f32 0.0, %v197
      %v228 = vsub.f32 0.0, %v198
      %v229 = vsub.f32 0.0, %v199
      %v230 = vsub.f32 0.0, %v200
      %v231 = vsub.f32 0.0, %v201
      %v232 = vsub.f32 0.0, %v202
      %v233 = vsub.f32 0.0, %v203
      %v234 = vmul.f32 %v204, 1.442695
      %v235 = vpow.pop %v234
      %v236 = vmul.f32 %v205, 1.442695
      %v237 = vpow.pop %v236
      %v238 = vmul.f32 %v206, 1.442695
      %v239 = vpow.pop %v238
      %v240 = vmul.f32 %v207, 1.442695
      %v241 = vpow.pop %v240
      %v242 = vmul.f32 %v208, 1.442695
      %v243 = vpow.pop %v242
      %v244 = vmul.f32 %v209, 1.442695
      %v245 = vpow.pop %v244
      %v246 = vmul.f32 %v210, 1.442695
      %v247 = vpow.pop %v246
      %v248 = vmul.f32 %v211, 1.442695
      %v249 = vpow.pop %v248
      %v250 = vmul.f32 %v212, 1.442695
      %v251 = vpow.pop %v250
      %v252 = vmul.f32 %v213, 1.442695
      %v253 = vpow.pop %v252
      %v254 = vmul.f32 %v214, 1.442695
      %v255 = vpow.pop %v254
      %v256 = vmul.f32 %v215, 1.442695
      %v257 = vpow.pop %v256
      %v258 = vmul.f32 %v216, 1.442695
      %v259 = vpow.pop %v258
      %v260 = vmul.f32 %v217, 1.442695
      %v261 = vpow.pop %v260
      %v262 = vmul.f32 %v218, 1.442695
      %v263 = vpow.pop %v262
      %v264 = vmul.f32 %v219, 1.442695
      %v265 = vpow.pop %v264
      %v266 = vmul.f32 %v220, 1.442695
      %v267 = vpow.pop %v266
      %v268 = vmul.f32 %v221, 1.442695
      %v269 = vpow.pop %v268
      %v270 = vmul.f32 %v222, 1.442695
      %v271 = vpow.pop %v270
      %v272 = vmul.f32 %v223, 1.442695
      %v273 = vpow.pop %v272
      %v274 = vmul.f32 %v224, 1.442695
      %v275 = vpow.pop %v274
      %v276 = vmul.f32 %v225, 1.442695
      %v277 = vpow.pop %v276
      %v278 = vmul.f32 %v226, 1.442695
      %v279 = vpow.pop %v278
      %v280 = vmul.f32 %v227, 1.442695
      %v281 = vpow.pop %v280
      %v282 = vmul.f32 %v228, 1.442695
      %v283 = vpow.pop %v282
      %v284 = vmul.f32 %v229, 1.442695
      %v285 = vpow.pop %v284
      %v286 = vmul.f32 %v230, 1.442695
      %v287 = vpow.pop %v286
      %v288 = vmul.f32 %v231, 1.442695
      %v289 = vpow.pop %v288
      %v290 = vmul.f32 %v232, 1.442695
      %v291 = vpow.pop %v290
      %v292 = vmul.f32 %v233, 1.442695
      %v293 = vpow.pop %v292
      %v294 = vadd.f32 %v235, 1.0
      %v295 = vadd.f32 %v237, 1.0
      %v296 = vadd.f32 %v239, 1.0
      %v297 = vadd.f32 %v241, 1.0
      %v298 = vadd.f32 %v243, 1.0
      %v299 = vadd.f32 %v245, 1.0
      %v300 = vadd.f32 %v247, 1.0
      %v301 = vadd.f32 %v249, 1.0
      %v302 = vadd.f32 %v251, 1.0
      %v303 = vadd.f32 %v253, 1.0
      %v304 = vadd.f32 %v255, 1.0
      %v305 = vadd.f32 %v257, 1.0
      %v306 = vadd.f32 %v259, 1.0
      %v307 = vadd.f32 %v261, 1.0
      %v308 = vadd.f32 %v263, 1.0
      %v309 = vadd.f32 %v265, 1.0
      %v310 = vadd.f32 %v267, 1.0
      %v311 = vadd.f32 %v269, 1.0
      %v312 = vadd.f32 %v271, 1.0
      %v313 = vadd.f32 %v273, 1.0
      %v314 = vadd.f32 %v275, 1.0
      %v315 = vadd.f32 %v277, 1.0
      %v316 = vadd.f32 %v279, 1.0
      %v317 = vadd.f32 %v281, 1.0
      %v318 = vadd.f32 %v283, 1.0
      %v319 = vadd.f32 %v285, 1.0
      %v320 = vadd.f32 %v287, 1.0
      %v321 = vadd.f32 %v289, 1.0
      %v322 = vadd.f32 %v291, 1.0
      %v323 = vadd.f32 %v293, 1.0
      %v324 = vrcp.pop %v294
      %v325 = vmul.f32 1.0, %v324
      %v326 = vrcp.pop %v295
      %v327 = vmul.f32 1.0, %v326
      %v328 = vrcp.pop %v296
      %v329 = vmul.f32 1.0, %v328
      %v330 = vrcp.pop %v297
      %v331 = vmul.f32 1.0, %v330
      %v332 = vrcp.pop %v298
      %v333 = vmul.f32 1.0, %v332
      %v334 = vrcp.pop %v299
      %v335 = vmul.f32 1.0, %v334
      %v336 = vrcp.pop %v300
      %v337 = vmul.f32 1.0, %v336
      %v338 = vrcp.pop %v301
      %v339 = vmul.f32 1.0, %v338
      %v340 = vrcp.pop %v302
      %v341 = vmul.f32 1.0, %v340
      %v342 = vrcp.pop %v303
      %v343 = vmul.f32 1.0, %v342
      %v344 = vrcp.pop %v304
      %v345 = vmul.f32 1.0, %v344
      %v346 = vrcp.pop %v305
      %v347 = vmul.f32 1.0, %v346
      %v348 = vrcp.pop %v306
      %v349 = vmul.f32 1.0, %v348
      %v350 = vrcp.pop %v307
      %v351 = vmul.f32 1.0, %v350
      %v352 = vrcp.pop %v308
      %v353 = vmul.f32 1.0, %v352
      %v354 = vrcp.pop %v309
      %v355 = vmul.f32 1.0, %v354
      %v356 = vrcp.pop %v310
      %v357 = vmul.f32 1.0, %v356
      %v358 = vrcp.pop %v311
      %v359 = vmul.f32 1.0, %v358
      %v360 = vrcp.pop %v312
      %v361 = vmul.f32 1.0, %v360
      %v362 = vrcp.pop %v313
      %v363 = vmul.f32 1.0, %v362
      %v364 = vrcp.pop %v314
      %v365 = vmul.f32 1.0, %v364
      %v366 = vrcp.pop %v315
      %v367 = vmul.f32 1.0, %v366
      %v368 = vrcp.pop %v316
      %v369 = vmul.f32 1.0, %v368
      %v370 = vrcp.pop %v317
      %v371 = vmul.f32 1.0, %v370
      %v372 = vrcp.pop %v318
      %v373 = vmul.f32 1.0, %v372
      %v374 = vrcp.pop %v319
      %v375 = vmul.f32 1.0, %v374
      %v376 = vrcp.pop %v320
      %v377 = vmul.f32 1.0, %v376
      %v378 = vrcp.pop %v321
      %v379 = vmul.f32 1.0, %v378
      %v380 = vrcp.pop %v322
      %v381 = vmul.f32 1.0, %v380
      %v382 = vrcp.pop %v323
      %v383 = vmul.f32 1.0, %v382
      %v384 = vld [vmem:[%s165] sm:$0xff]
      %v385 = vld [vmem:[%s165 + $0x8] sm:$0xff]
      %v386 = vld [vmem:[%s165 + $0x10] sm:$0xff]
      %v387 = vld [vmem:[%s165 + $0x18] sm:$0xff]
      %v388 = vld [vmem:[%s165 + $0x20] sm:$0xff]
      %v389 = vld [vmem:[%s165 + $0x28] sm:$0xff]
      %v390 = vld [vmem:[%s165 + $0x30] sm:$0xff]
      %v391 = vld [vmem:[%s165 + $0x38] sm:$0xff]
      %v392 = vld [vmem:[%s165 + $0x40] sm:$0xff]
      %v393 = vld [vmem:[%s165 + $0x48] sm:$0xff]
      %v394 = vld [vmem:[%s165 + $0x50] sm:$0xff]
      %v395 = vld [vmem:[%s165 + $0x58] sm:$0xff]
      %v396 = vld [vmem:[%s165 + $0x60] sm:$0xff]
      %v397 = vld [vmem:[%s165 + $0x68] sm:$0xff]
      %v398 = vld [vmem:[%s165 + $0x70] sm:$0xff]
      %v399 = vld [vmem:[%s165 + $0x78] sm:$0xff]
      %v400 = vld [vmem:[%s165 + $0x80] sm:$0xff]
      %v401 = vld [vmem:[%s165 + $0x88] sm:$0xff]
      %v402 = vld [vmem:[%s165 + $0x90] sm:$0xff]
      %v403 = vld [vmem:[%s165 + $0x98] sm:$0xff]
      %v404 = vld [vmem:[%s165 + $0xa0] sm:$0xff]
      %v405 = vld [vmem:[%s165 + $0xa8] sm:$0xff]
      %v406 = vld [vmem:[%s165 + $0xb0] sm:$0xff]
      %v407 = vld [vmem:[%s165 + $0xb8] sm:$0xff]
      %v408 = vld [vmem:[%s165 + $0xc0] sm:$0xff]
      %v409 = vld [vmem:[%s165 + $0xc8] sm:$0xff]
      %v410 = vld [vmem:[%s165 + $0xd0] sm:$0xff]
      %v411 = vld [vmem:[%s165 + $0xd8] sm:$0xff]
      %v412 = vld [vmem:[%s165 + $0xe0] sm:$0xff]
      %v413 = vld [vmem:[%s165 + $0xe8] sm:$0xff]
      %v414 = vld [vmem:[%s165 + $0xf0] sm:$0xff]
      %v415 = vld [vmem:[%s165 + $0xf8] sm:$0xff]
      %v416 = vld [vmem:[%s165 + $0x100] sm:$0xff]
      %v417 = vld [vmem:[%s165 + $0x108] sm:$0xff]
      %v418 = vld [vmem:[%s165 + $0x110] sm:$0xff]
      %v419 = vld [vmem:[%s165 + $0x118] sm:$0xff]
      %v420 = vld [vmem:[%s165 + $0x120] sm:$0xff]
      %v421 = vld [vmem:[%s165 + $0x128] sm:$0xff]
      %v422 = vld [vmem:[%s165 + $0x130] sm:$0xff]
      %v423 = vld [vmem:[%s165 + $0x138] sm:$0xff]
      %v424 = vld [vmem:[%s165 + $0x140] sm:$0xff]
      %v425 = vld [vmem:[%s165 + $0x148] sm:$0xff]
      %v426 = vld [vmem:[%s165 + $0x150] sm:$0xff]
      %v427 = vld [vmem:[%s165 + $0x158] sm:$0xff]
      %v428 = vld [vmem:[%s165 + $0x160] sm:$0xff]
      %v429 = vld [vmem:[%s165 + $0x168] sm:$0xff]
      %v430 = vld [vmem:[%s165 + $0x170] sm:$0xff]
      %v431 = vld [vmem:[%s165 + $0x178] sm:$0xff]
      %v432 = vld [vmem:[%s165 + $0x180] sm:$0xff]
      %v433 = vld [vmem:[%s165 + $0x188] sm:$0xff]
      %v434 = vld [vmem:[%s165 + $0x190] sm:$0xff]
      %v435 = vld [vmem:[%s165 + $0x198] sm:$0xff]
      %v436 = vld [vmem:[%s165 + $0x1a0] sm:$0xff]
      %v437 = vld [vmem:[%s165 + $0x1a8] sm:$0xff]
      %v438 = vld [vmem:[%s165 + $0x1b0] sm:$0xff]
      %v439 = vld [vmem:[%s165 + $0x1b8] sm:$0xff]
      %v440 = vld [vmem:[%s165 + $0x1c0] sm:$0xff]
      %v441 = vld [vmem:[%s165 + $0x1c8] sm:$0xff]
      %v442 = vld [vmem:[%s165 + $0x1d0] sm:$0xff]
      %v443 = vld [vmem:[%s165 + $0x1d8] sm:$0xff]
      %445 = vset.pattern.permute.xlu0 0
      %446 = vperm.xlu0 %445, %v325
      %v447 = vpop.permute.xlu0 %446
      %450 = vset.pattern.permute.xlu0 0
      %451 = vperm.xlu0 %450, %v327
      %v452 = vpop.permute.xlu0 %451
      %455 = vset.pattern.permute.xlu0 0
      %456 = vperm.xlu0 %455, %v329
      %v457 = vpop.permute.xlu0 %456
      %460 = vset.pattern.permute.xlu0 0
      %461 = vperm.xlu0 %460, %v331
      %v462 = vpop.permute.xlu0 %461
      %465 = vset.pattern.permute.xlu0 0
      %466 = vperm.xlu0 %465, %v333
      %v467 = vpop.permute.xlu0 %466
      %470 = vset.pattern.permute.xlu0 0
      %471 = vperm.xlu0 %470, %v335
      %v472 = vpop.permute.xlu0 %471
      %475 = vset.pattern.permute.xlu0 0
      %476 = vperm.xlu0 %475, %v337
      %v477 = vpop.permute.xlu0 %476
      %480 = vset.pattern.permute.xlu0 0
      %481 = vperm.xlu0 %480, %v339
      %v482 = vpop.permute.xlu0 %481
      %485 = vset.pattern.permute.xlu0 0
      %486 = vperm.xlu0 %485, %v341
      %v487 = vpop.permute.xlu0 %486
      %490 = vset.pattern.permute.xlu0 0
      %491 = vperm.xlu0 %490, %v343
      %v492 = vpop.permute.xlu0 %491
      %495 = vset.pattern.permute.xlu0 0
      %496 = vperm.xlu0 %495, %v345
      %v497 = vpop.permute.xlu0 %496
      %500 = vset.pattern.permute.xlu0 0
      %501 = vperm.xlu0 %500, %v347
      %v502 = vpop.permute.xlu0 %501
      %505 = vset.pattern.permute.xlu0 0
      %506 = vperm.xlu0 %505, %v349
      %v507 = vpop.permute.xlu0 %506
      %510 = vset.pattern.permute.xlu0 0
      %511 = vperm.xlu0 %510, %v351
      %v512 = vpop.permute.xlu0 %511
      %515 = vset.pattern.permute.xlu0 0
      %516 = vperm.xlu0 %515, %v353
      %v517 = vpop.permute.xlu0 %516
      %520 = vset.pattern.permute.xlu0 0
      %521 = vperm.xlu0 %520, %v355
      %v522 = vpop.permute.xlu0 %521
      %525 = vset.pattern.permute.xlu0 0
      %526 = vperm.xlu0 %525, %v357
      %v527 = vpop.permute.xlu0 %526
      %530 = vset.pattern.permute.xlu0 0
      %531 = vperm.xlu0 %530, %v359
      %v532 = vpop.permute.xlu0 %531
      %535 = vset.pattern.permute.xlu0 0
      %536 = vperm.xlu0 %535, %v361
      %v537 = vpop.permute.xlu0 %536
      %540 = vset.pattern.permute.xlu0 0
      %541 = vperm.xlu0 %540, %v363
      %v542 = vpop.permute.xlu0 %541
      %545 = vset.pattern.permute.xlu0 0
      %546 = vperm.xlu0 %545, %v365
      %v547 = vpop.permute.xlu0 %546
      %550 = vset.pattern.permute.xlu0 0
      %551 = vperm.xlu0 %550, %v367
      %v552 = vpop.permute.xlu0 %551
      %555 = vset.pattern.permute.xlu0 0
      %556 = vperm.xlu0 %555, %v369
      %v557 = vpop.permute.xlu0 %556
      %560 = vset.pattern.permute.xlu0 0
      %561 = vperm.xlu0 %560, %v371
      %v562 = vpop.permute.xlu0 %561
      %565 = vset.pattern.permute.xlu0 0
      %566 = vperm.xlu0 %565, %v373
      %v567 = vpop.permute.xlu0 %566
      %570 = vset.pattern.permute.xlu0 0
      %571 = vperm.xlu0 %570, %v375
      %v572 = vpop.permute.xlu0 %571
      %575 = vset.pattern.permute.xlu0 0
      %576 = vperm.xlu0 %575, %v377
      %v577 = vpop.permute.xlu0 %576
      %580 = vset.pattern.permute.xlu0 0
      %581 = vperm.xlu0 %580, %v379
      %v582 = vpop.permute.xlu0 %581
      %585 = vset.pattern.permute.xlu0 0
      %586 = vperm.xlu0 %585, %v381
      %v587 = vpop.permute.xlu0 %586
      %590 = vset.pattern.permute.xlu0 0
      %591 = vperm.xlu0 %590, %v383
      %v592 = vpop.permute.xlu0 %591
      %v594 = vmul.f32 %v447, %v384
      %v595 = vmul.f32 %v447, %v385
      %v596 = vmul.f32 %v452, %v386
      %v597 = vmul.f32 %v452, %v387
      %v598 = vmul.f32 %v457, %v388
      %v599 = vmul.f32 %v457, %v389
      %v600 = vmul.f32 %v462, %v390
      %v601 = vmul.f32 %v462, %v391
      %v602 = vmul.f32 %v467, %v392
      %v603 = vmul.f32 %v467, %v393
      %v604 = vmul.f32 %v472, %v394
      %v605 = vmul.f32 %v472, %v395
      %v606 = vmul.f32 %v477, %v396
      %v607 = vmul.f32 %v477, %v397
      %v608 = vmul.f32 %v482, %v398
      %v609 = vmul.f32 %v482, %v399
      %v610 = vmul.f32 %v487, %v400
      %v611 = vmul.f32 %v487, %v401
      %v612 = vmul.f32 %v492, %v402
      %v613 = vmul.f32 %v492, %v403
      %v614 = vmul.f32 %v497, %v404
      %v615 = vmul.f32 %v497, %v405
      %v616 = vmul.f32 %v502, %v406
      %v617 = vmul.f32 %v502, %v407
      %v618 = vmul.f32 %v507, %v408
      %v619 = vmul.f32 %v507, %v409
      %v620 = vmul.f32 %v512, %v410
      %v621 = vmul.f32 %v512, %v411
      %v622 = vmul.f32 %v517, %v412
      %v623 = vmul.f32 %v517, %v413
      %v624 = vmul.f32 %v522, %v414
      %v625 = vmul.f32 %v522, %v415
      %v626 = vmul.f32 %v527, %v416
      %v627 = vmul.f32 %v527, %v417
      %v628 = vmul.f32 %v532, %v418
      %v629 = vmul.f32 %v532, %v419
      %v630 = vmul.f32 %v537, %v420
      %v631 = vmul.f32 %v537, %v421
      %v632 = vmul.f32 %v542, %v422
      %v633 = vmul.f32 %v542, %v423
      %v634 = vmul.f32 %v547, %v424
      %v635 = vmul.f32 %v547, %v425
      %v636 = vmul.f32 %v552, %v426
      %v637 = vmul.f32 %v552, %v427
      %v638 = vmul.f32 %v557, %v428
      %v639 = vmul.f32 %v557, %v429
      %v640 = vmul.f32 %v562, %v430
      %v641 = vmul.f32 %v562, %v431
      %v642 = vmul.f32 %v567, %v432
      %v643 = vmul.f32 %v567, %v433
      %v644 = vmul.f32 %v572, %v434
      %v645 = vmul.f32 %v572, %v435
      %v646 = vmul.f32 %v577, %v436
      %v647 = vmul.f32 %v577, %v437
      %v648 = vmul.f32 %v582, %v438
      %v649 = vmul.f32 %v582, %v439
      %v650 = vmul.f32 %v587, %v440
      %v651 = vmul.f32 %v587, %v441
      %v652 = vmul.f32 %v592, %v442
      %v653 = vmul.f32 %v592, %v443
      %654 = vst [vmem:[%s172] sm:$0xff] %v594
      %vm655 = vcmask 556032
      %656 = vst.msk [vmem:[%s172 + $0x8] sm:$0xff] %vm655, %v595
      %657 = vst [vmem:[%s172 + $0x10] sm:$0xff] %v596
      %658 = vst.msk [vmem:[%s172 + $0x18] sm:$0xff] %vm655, %v597
      %659 = vst [vmem:[%s172 + $0x20] sm:$0xff] %v598
      %660 = vst.msk [vmem:[%s172 + $0x28] sm:$0xff] %vm655, %v599
      %661 = vst [vmem:[%s172 + $0x30] sm:$0xff] %v600
      %662 = vst.msk [vmem:[%s172 + $0x38] sm:$0xff] %vm655, %v601
      %663 = vst [vmem:[%s172 + $0x40] sm:$0xff] %v602
      %664 = vst.msk [vmem:[%s172 + $0x48] sm:$0xff] %vm655, %v603
      %665 = vst [vmem:[%s172 + $0x50] sm:$0xff] %v604
      %666 = vst.msk [vmem:[%s172 + $0x58] sm:$0xff] %vm655, %v605
      %667 = vst [vmem:[%s172 + $0x60] sm:$0xff] %v606
      %668 = vst.msk [vmem:[%s172 + $0x68] sm:$0xff] %vm655, %v607
      %669 = vst [vmem:[%s172 + $0x70] sm:$0xff] %v608
      %670 = vst.msk [vmem:[%s172 + $0x78] sm:$0xff] %vm655, %v609
      %671 = vst [vmem:[%s172 + $0x80] sm:$0xff] %v610
      %672 = vst.msk [vmem:[%s172 + $0x88] sm:$0xff] %vm655, %v611
      %673 = vst [vmem:[%s172 + $0x90] sm:$0xff] %v612
      %674 = vst.msk [vmem:[%s172 + $0x98] sm:$0xff] %vm655, %v613
      %675 = vst [vmem:[%s172 + $0xa0] sm:$0xff] %v614
      %676 = vst.msk [vmem:[%s172 + $0xa8] sm:$0xff] %vm655, %v615
      %677 = vst [vmem:[%s172 + $0xb0] sm:$0xff] %v616
      %678 = vst.msk [vmem:[%s172 + $0xb8] sm:$0xff] %vm655, %v617
      %679 = vst [vmem:[%s172 + $0xc0] sm:$0xff] %v618
      %680 = vst.msk [vmem:[%s172 + $0xc8] sm:$0xff] %vm655, %v619
      %681 = vst [vmem:[%s172 + $0xd0] sm:$0xff] %v620
      %682 = vst.msk [vmem:[%s172 + $0xd8] sm:$0xff] %vm655, %v621
      %683 = vst [vmem:[%s172 + $0xe0] sm:$0xff] %v622
      %684 = vst.msk [vmem:[%s172 + $0xe8] sm:$0xff] %vm655, %v623
      %685 = vst [vmem:[%s172 + $0xf0] sm:$0xff] %v624
      %686 = vst.msk [vmem:[%s172 + $0xf8] sm:$0xff] %vm655, %v625
      %687 = vst [vmem:[%s172 + $0x100] sm:$0xff] %v626
      %688 = vst.msk [vmem:[%s172 + $0x108] sm:$0xff] %vm655, %v627
      %689 = vst [vmem:[%s172 + $0x110] sm:$0xff] %v628
      %690 = vst.msk [vmem:[%s172 + $0x118] sm:$0xff] %vm655, %v629
      %691 = vst [vmem:[%s172 + $0x120] sm:$0xff] %v630
      %692 = vst.msk [vmem:[%s172 + $0x128] sm:$0xff] %vm655, %v631
      %693 = vst [vmem:[%s172 + $0x130] sm:$0xff] %v632
      %694 = vst.msk [vmem:[%s172 + $0x138] sm:$0xff] %vm655, %v633
      %695 = vst [vmem:[%s172 + $0x140] sm:$0xff] %v634
      %696 = vst.msk [vmem:[%s172 + $0x148] sm:$0xff] %vm655, %v635
      %697 = vst [vmem:[%s172 + $0x150] sm:$0xff] %v636
      %698 = vst.msk [vmem:[%s172 + $0x158] sm:$0xff] %vm655, %v637
      %699 = vst [vmem:[%s172 + $0x160] sm:$0xff] %v638
      %700 = vst.msk [vmem:[%s172 + $0x168] sm:$0xff] %vm655, %v639
      %701 = vst [vmem:[%s172 + $0x170] sm:$0xff] %v640
      %702 = vst.msk [vmem:[%s172 + $0x178] sm:$0xff] %vm655, %v641
      %703 = vst [vmem:[%s172 + $0x180] sm:$0xff] %v642
      %704 = vst.msk [vmem:[%s172 + $0x188] sm:$0xff] %vm655, %v643
      %705 = vst [vmem:[%s172 + $0x190] sm:$0xff] %v644
      %706 = vst.msk [vmem:[%s172 + $0x198] sm:$0xff] %vm655, %v645
      %707 = vst [vmem:[%s172 + $0x1a0] sm:$0xff] %v646
      %708 = vst.msk [vmem:[%s172 + $0x1a8] sm:$0xff] %vm655, %v647
      %709 = vst [vmem:[%s172 + $0x1b0] sm:$0xff] %v648
      %710 = vst.msk [vmem:[%s172 + $0x1b8] sm:$0xff] %vm655, %v649
      %711 = vst [vmem:[%s172 + $0x1c0] sm:$0xff] %v650
      %712 = vst.msk [vmem:[%s172 + $0x1c8] sm:$0xff] %vm655, %v651
      %713 = vst [vmem:[%s172 + $0x1d0] sm:$0xff] %v652
      %714 = vst.msk [vmem:[%s172 + $0x1d8] sm:$0xff] %vm655, %v653
      %s715 = smul.u32 30, %s13
      %p716 = scmp.lt.s32.totalorder %s715, 59
      %s717 = scalar_select %p716, %s715, 59
      %s718 = smul.addr %s717, 2
      %s719 = smul.addr %s718, 8
      %s720 = scalar_lea.vmem %s2, %s719
      // Predicated region
      $region29: #{tpu_custom_call.1} parent=27 // pred_check
        %p721 = pneg %p83
      $region30: #{tpu_custom_call.1} parent=27 // pred_check_branch
        %723 = sbr.rel (%p721) target = $region32
      $region31: #{tpu_custom_call.1} parent=27 // pred_region
        %s724 = smul.u32 30, %s13
      $region32: #{tpu_custom_call.1} parent=27 // pred_fallthru
        _
    $region28: #{tpu_custom_call.1} parent=5 // pred_fallthru
      _
    %p725 = scmp.le.s32.totalorder 2, %s8
    // Predicated region
    $region33: #{tpu_custom_call.1} parent=5 // pred_check
      %p726 = pneg %p725
    $region34: #{tpu_custom_call.1} parent=5 // pred_check_branch
      %728 = sbr.rel (%p726) target = $region36
    $region35: #{tpu_custom_call.1} parent=5 // pred_region
      %s729 = ssub.s32 %s8, 2
      // Predicated region
      $region37: #{tpu_custom_call.1} parent=35 // pred_check
        %p730 = pneg %p89
      $region38: #{tpu_custom_call.1} parent=35 // pred_check_branch
        %732 = sbr.rel (%p730) target = $region40
      $region39: #{tpu_custom_call.1} parent=35 // pred_region
        %s733 = smul.u32 30, %s14
        %p734 = scmp.lt.s32.totalorder %s733, 59
        %s735 = scalar_select %p734, %s733, 59
        %s736 = smul.addr %s735, 2
        %s737 = smul.addr %s736, 8
        %s738 = scalar_lea.vmem %s2, %s737
      $region40: #{tpu_custom_call.1} parent=35 // pred_fallthru
        _
    $region36: #{tpu_custom_call.1} parent=5 // pred_fallthru
      _
  $region6: #{tpu_custom_call.1} parent=0 // loop_footer
    %s12 = sadd.s32 1, %s8
  $region7: #{tpu_custom_call.1} parent=0 // loop_footer_branch
    %7 = sbr.rel target = $region3
  $region8: #{tpu_custom_call.1} parent=0 // loop_exit
    _

</llo_original>
